<compile_context>
chip_gen: v5e
topology: v5e:2x2
jax: 0.10.0
libtpu: 0.0.40
codegen_flags: <defaults>
</compile_context>

<pallas_src>
import jax
import jax.numpy as jnp
from jax import lax
from jax.experimental import pallas as pl
from jax.experimental.pallas import tpu as pltpu


def _physical_vmem_bytes():
    """Per-core VMEM of the current TPU generation (conservative fallback)."""
    try:
        return int(pltpu.get_tpu_info().vmem_capacity_bytes)
    except Exception:
        return 64 * 1024 * 1024   # v7x per-TensorCore size: safe everywhere


def _make_gin_kernel(mm_dtype, apply_conv):
    """Builds the kernel body. apply_conv=False -> 1x1 conv hoisted to wrapper."""

    def body(eps_ref, x_ref, idx_ref, w_ref, b_ref, o_ref, acc_ref):
        # eps_ref: (1,) f32 SMEM (scalar prefetch)
        # x_ref:   (BBLK, C_feat, NC) f32       idx_ref: (BBLK, K, TN) int32
        # w_ref:   (C_out, C_feat) f32 or None  b_ref:   (C_out, 1) f32
        # o_ref:   (BBLK, C_out, TN)            acc_ref: (BBLK, C_feat, TN) f32 scratch
        bblk, c_feat, nc = x_ref.shape
        k = idx_ref.shape[1]
        tn = idx_ref.shape[2]

        ni = pl.program_id(1)          # output-vertex tile
        ci = pl.program_id(2)          # aggregation-row (contraction) chunk
        eps = eps_ref[0]

        @pl.when(ci == 0)
        def _init():
            acc_ref[...] = jnp.zeros_like(acc_ref)

        # Global row / column ids of this (nc, tn) slab of the N x N one-hot
        # aggregation matrix G (hoisted out of the per-batch loop).
        row_global = ci * nc + lax.broadcasted_iota(jnp.int32, (nc, tn), 0)
        col_global = ni * tn + lax.broadcasted_iota(jnp.int32, (nc, tn), 1)
        diag_mask = row_global == col_global

        for b in range(bblk):          # bblk is small & static -> unrolled
            # G build: integer one-hot neighbor counts (int32 accumulate,
            # single convert to f32 after the K loop).
            # NOTE: indices outside [0, N) (e.g. -1 padding sentinels) match
            # nothing here, unlike torch.gather / jnp wrap-around semantics.
            cnt = jnp.zeros((nc, tn), jnp.int32)
            if k >= 16:
                def k_step(kk, cnt):
                    row = idx_ref[b, pl.ds(kk, 1), :]        # (1, TN)
                    return cnt + (row_global == row)
                cnt = lax.fori_loop(0, k, k_step, cnt)
            else:
                idx_b = idx_ref[b]                           # (K, TN)
                for kk in range(k):
                    cnt = cnt + (row_global == idx_b[kk:kk + 1, :])

            cnt_f = cnt.astype(jnp.float32)
            # (1 + eps) * x self-term folded into G's diagonal.
            g = jnp.where(diag_mask, cnt_f + (1.0 + eps), cnt_f)

            # Aggregation matmul on the bf16 MXU path (f32 accumulation).
            acc_ref[b] = acc_ref[b] + jnp.dot(
                x_ref[b].astype(mm_dtype), g.astype(mm_dtype),
                preferred_element_type=jnp.float32)

        @pl.when(ci == pl.num_programs(2) - 1)
        def _finalize():
            bias = b_ref[...]                                # (C_out, 1)
            if apply_conv:
                w = w_ref[...].astype(mm_dtype)              # (C_out, C_feat)
            for b in range(bblk):
                h = acc_ref[b]                               # (C_feat, TN) f32
                if apply_conv:
                    out = jnp.dot(w, h.astype(mm_dtype),
                                  preferred_element_type=jnp.float32) + bias
                else:
                    out = h + bias
                # Lane-dense store: output lane axis is the vertex tile TN.
                o_ref[b] = jnp.maximum(out, 0.0).astype(o_ref.dtype)

    if apply_conv:
        def kernel(eps_ref, x_ref, idx_ref, w_ref, b_ref, o_ref, acc_ref):
            body(eps_ref, x_ref, idx_ref, w_ref, b_ref, o_ref, acc_ref)
    else:
        def kernel(eps_ref, x_ref, idx_ref, b_ref, o_ref, acc_ref):
            body(eps_ref, x_ref, idx_ref, None, b_ref, o_ref, acc_ref)
    return kernel


def gin_conv2d(x_nchw, edge_index, weight, bias, eps, *,
               bblk=None, tn=None, nc=None,
               mm_dtype=jnp.bfloat16, out_dtype=None, hoist_conv=None):
    """GINConv2d forward.

    x_nchw:     (B, C_in, N, 1) float32
    edge_index: (2, B, N, K)    int (edge_index[0] = neighbor ids)
    weight:     (C_out, C_in)   float32 (1x1 Conv2d weight, squeezed)
    bias:       (C_out,)        float32
    eps:        scalar
    mm_dtype:   MXU matmul operand dtype (bf16 default; f32 accumulation)
    out_dtype:  output dtype (defaults to input dtype; bf16 halves store bytes)
    returns:    (B, C_out, N, 1)
    """
    # TODO(synk): the optional `y` second feature tensor of GINConv2d.forward
    # (gather from y instead of x) is not implemented here.
    B, C_in, N, _ = x_nchw.shape
    K = edge_index.shape[-1]
    C_out = weight.shape[0]
    out_dtype = x_nchw.dtype if out_dtype is None else out_dtype

    # Generation-aware VMEM budget: <= ~48 MiB on v7x (64 MiB/TC), ~96 MiB on
    # v5e/v6e (128 MiB), leaving headroom for double-buffering.
    phys = _physical_vmem_bytes()
    vmem_limit = int(min((phys * 3) // 4, 100 * 1024 * 1024))

    x = x_nchw[..., 0].astype(jnp.float32)                 # (B, C_in, N), no transpose
    w = weight.astype(jnp.float32)                         # (C_out, C_in)
    b = bias.reshape(C_out, 1).astype(jnp.float32)
    eps_arr = jnp.asarray([eps], dtype=jnp.float32)

    # Hoist the tiny-contraction 1x1 conv into one well-shaped XLA GEMM when it
    # does not increase the aggregation-matmul channel count.
    if hoist_conv is None:
        hoist_conv = C_out <= C_in
    if hoist_conv:
        x = jnp.einsum("oc,bcn->bon", w, x)                # (B, C_out, N)
        C_feat = C_out
    else:
        C_feat = C_in

    # Output-vertex tile (lane width): 256 only on 128 MiB-VMEM generations
    # (v5e/v6e with N % 256 == 0), otherwise 128; full N for small graphs.
    if tn is None:
        if N % 256 == 0 and phys >= 128 * 1024 * 1024:
            tn = 256
        elif N % 128 == 0:
            tn = 128
        else:
            tn = N   # TODO(synk): pad N to a multiple of 128 for large unaligned N.
    # Contraction (aggregation-row) chunk: bounds the live (nc, tn) G slab.
    if nc is None:
        if N % 256 == 0:
            nc = 256
        elif N % 128 == 0:
            nc = 128
        else:
            nc = N
    assert N % tn == 0 and N % nc == 0, (N, tn, nc)
    n_chunks = N // nc

    # Batch elements folded per grid step, under the VMEM budget.
    if bblk is None:
        bblk = 1
        for cand in range(1, min(B, 8) + 1):
            if B % cand:
                continue
            need = (2 * 4 * cand * (C_feat * nc + K * tn + C_out * tn)   # dbl-buffered blocks
                    + 4 * cand * C_feat * tn                             # f32 accumulator
                    + 8 * 4 * nc * tn                                    # G / count temporaries
                    + 2 * 4 * C_out * (C_in + 1))                        # weights + bias
            if need <= vmem_limit // 2:
                bblk = cand
    bblk = min(bblk, B)
    while B % bblk:
        bblk -= 1

    # Neighbor ids transposed to (B, K, N): lane-dense DMA, cheap per-k rows.
    # TODO(synk): produce edge_index in (B, K, N) layout upstream to avoid this pass.
    idx_t = jnp.transpose(edge_index[0].astype(jnp.int32), (0, 2, 1))

    kernel = _make_gin_kernel(mm_dtype=mm_dtype, apply_conv=not hoist_conv)

    in_specs = [
        # x chunk follows the contraction axis (auto-pipelined DMA per chunk).
        pl.BlockSpec((bblk, C_feat, nc), lambda bi, ni, ci, eps_sm: (bi, 0, ci)),
        # neighbor ids: constant across ci -> fetched once per (bi, ni).
        pl.BlockSpec((bblk, K, tn), lambda bi, ni, ci, eps_sm: (bi, 0, ni)),
    ]
    args = [eps_arr, x, idx_t]
    if not hoist_conv:
        in_specs.append(pl.BlockSpec((C_out, C_in), lambda bi, ni, ci, eps_sm: (0, 0)))
        args.append(w)
    in_specs.append(pl.BlockSpec((C_out, 1), lambda bi, ni, ci, eps_sm: (0, 0)))
    args.append(b)

    grid_spec = pltpu.PrefetchScalarGridSpec(
        num_scalar_prefetch=1,                      # eps -> SMEM
        grid=(B // bblk, N // tn, n_chunks),        # reduction (chunk) axis last
        in_specs=in_specs,
        out_specs=pl.BlockSpec((bblk, C_out, tn), lambda bi, ni, ci, eps_sm: (bi, 0, ni)),
        scratch_shapes=[pltpu.VMEM((bblk, C_feat, tn), jnp.float32)],
    )

    flops = 2 * B * C_feat * N * N + (0 if hoist_conv else 2 * B * C_out * C_in * N)
    bytes_accessed = 4 * (B * C_feat * N * (N // tn) + B * K * N + B * C_out * N
                          + C_out * (C_in + 1))

    out = pl.pallas_call(
        kernel,
        out_shape=jax.ShapeDtypeStruct((B, C_out, N), out_dtype),
        grid_spec=grid_spec,
        compiler_params=pltpu.CompilerParams(
            dimension_semantics=("parallel", "parallel", "arbitrary"),
            vmem_limit_bytes=vmem_limit),
        cost_estimate=pl.CostEstimate(flops=int(flops), transcendentals=0,
                                      bytes_accessed=int(bytes_accessed)),
    )(*args)

    # Back to NCHW (B, C_out, N, 1): only add the W=1 axis, no transpose.
    return out[..., None]


def gin_ref(x_nchw, edge_index, weight, bias, eps):
    """Pure-JAX f32 reference matching the PyTorch forward."""
    x = x_nchw[..., 0]                       # (B, C, N)
    idx = edge_index[0]                      # (B, N, K)

    def one(xb, idxb):                       # xb (C, N), idxb (N, K)
        return xb[:, idxb].sum(-1)           # (C, N)

    x_j = jax.vmap(one)(x, idx)              # (B, C, N)
    h = (1.0 + eps) * x + x_j
    out = jnp.einsum("oc,bcn->bon", weight, h) + bias[None, :, None]
    return jnp.maximum(out, 0.0)[..., None]


def _check(out, ref, atol, rtol, name):
    out = jnp.asarray(out, jnp.float32)
    assert out.shape == ref.shape, (name, out.shape, ref.shape)
    assert jnp.allclose(out, ref, atol=atol, rtol=rtol), f"{name}: mismatch vs reference"


if __name__ == "__main__":
    key = jax.random.PRNGKey(0)

    # ---- case 1: fused 1x1 conv (C_out > C_in), single tile / single chunk ----
    B, C_in, C_out, N, K = 2, 4, 8, 16, 8
    k1, k2, k3, k4, key = jax.random.split(key, 5)
    x = jax.random.normal(k1, (B, C_in, N, 1), dtype=jnp.float32)
    idx0 = jax.random.randint(k2, (B, N, K), 0, N, dtype=jnp.int32)     # neighbor ids
    idx1 = jnp.broadcast_to(jnp.arange(N, dtype=jnp.int32)[None, :, None], (B, N, K))
    edge_index = jnp.stack([idx0, idx1], axis=0)                        # (2, B, N, K)
    weight = jax.random.normal(k3, (C_out, C_in), dtype=jnp.float32) * 0.1
    bias = jax.random.normal(k4, (C_out,), dtype=jnp.float32) * 0.1
    eps = 0.0
    ref = gin_ref(x, edge_index, weight, bias, eps)

    # exact f32 MXU path
    out_f32 = jax.block_until_ready(
        gin_conv2d(x, edge_index, weight, bias, eps, mm_dtype=jnp.float32))
    _check(out_f32, ref, 1e-4, 1e-4, "fused/f32")

    # default bf16 MXU path (f32 accumulation)
    out_bf16 = jax.block_until_ready(gin_conv2d(x, edge_index, weight, bias, eps))
    _check(out_bf16, ref, 1e-1, 1e-1, "fused/bf16")

    # ---- case 2: hoisted conv (C_out <= C_in), multi-tile, multi-chunk grid,
    #              fori_loop K path (K=16), bf16 matmuls + bf16 output ----
    B, C_in, C_out, N, K = 4, 8, 4, 256, 16
    k1, k2, k3, k4, key = jax.random.split(key, 5)
    x = jax.random.normal(k1, (B, C_in, N, 1), dtype=jnp.float32)
    idx0 = jax.random.randint(k2, (B, N, K), 0, N, dtype=jnp.int32)
    idx1 = jnp.broadcast_to(jnp.arange(N, dtype=jnp.int32)[None, :, None], (B, N, K))
    edge_index = jnp.stack([idx0, idx1], axis=0)
    weight = jax.random.normal(k3, (C_out, C_in), dtype=jnp.float32) * 0.1
    bias = jax.random.normal(k4, (C_out,), dtype=jnp.float32) * 0.1
    eps = 0.25
    ref = gin_ref(x, edge_index, weight, bias, eps)

    out2 = jax.block_until_ready(
        gin_conv2d(x, edge_index, weight, bias, eps,
                   tn=128, nc=128, out_dtype=jnp.bfloat16))
    _check(out2, ref, 1e-1, 1e-1, "hoisted/bf16")

    print("KERNEL_OK")
</pallas_src>

<mosaic_0001>
module attributes {stable_mosaic.version = 11 : i64} {
  func.func @kernel(%arg0: i32, %arg1: i32, %arg2: i32, %arg3: memref<1xf32, #tpu.memory_space<smem>>, %arg4: memref<2x4x16xf32, #tpu.memory_space<vmem>>, %arg5: memref<2x8x16xi32, #tpu.memory_space<vmem>>, %arg6: memref<8x4xf32, #tpu.memory_space<vmem>>, %arg7: memref<8x1xf32, #tpu.memory_space<vmem>>, %arg8: memref<2x8x16xf32, #tpu.memory_space<vmem>>, %arg9: memref<2x4x16xf32, #tpu.memory_space<vmem>>) attributes {dimension_semantics = [#tpu.dimension_semantics<parallel>, #tpu.dimension_semantics<parallel>, #tpu.dimension_semantics<arbitrary>], iteration_bounds = array<i64: 1, 1, 1>, scalar_prefetch = 1 : i64, scratch_operands = 1 : i64, tpu.core_type = #tpu.core_type<tc>, window_params = [{transform_indices = @transform_0, window_bounds = array<i64: 2, 4, 16>}, {transform_indices = @transform_1, window_bounds = array<i64: 2, 8, 16>}, {pipeline_mode = #tpu.pipeline_mode<synchronous>, transform_indices = @transform_2, window_bounds = array<i64: 8, 4>}, {pipeline_mode = #tpu.pipeline_mode<synchronous>, transform_indices = @transform_3, window_bounds = array<i64: 8, 1>}, {transform_indices = @transform_4, window_bounds = array<i64: 2, 8, 16>}]} {
    %c0 = arith.constant 0 : index
    %0 = memref.load %arg3[%c0] : memref<1xf32, #tpu.memory_space<smem>>
    %c0_i32 = arith.constant 0 : i32
    %1 = arith.cmpi eq, %arg2, %c0_i32 : i32
    %2 = arith.extui %1 : i1 to i32
    %c0_i32_0 = arith.constant 0 : i32
    %3 = arith.cmpi ne, %2, %c0_i32_0 : i32
    scf.if %3 {
      %cst_32 = arith.constant 0.000000e+00 : f32
      %130 = vector.broadcast %cst_32 : f32 to vector<2x4x16xf32>
      %c0_33 = arith.constant 0 : index
      %c0_34 = arith.constant 0 : index
      %c0_35 = arith.constant 0 : index
      %131 = vector.load %arg9[%c0_33, %c0_34, %c0_35] : memref<2x4x16xf32, #tpu.memory_space<vmem>>, vector<2x4x16xf32>
      tpu.vector_store %arg9[%c0_33, %c0_34, %c0_35], %130 {strides = array<i32>} : memref<2x4x16xf32, #tpu.memory_space<vmem>>, vector<2x4x16xf32>,
    } else {
    }
    %c16_i32 = arith.constant 16 : i32
    %4 = arith.muli %arg2, %c16_i32 : i32
    %5 = tpu.iota {dimensions = array<i32: 0>} : vector<16x16xi32>
    %6 = vector.broadcast %4 : i32 to vector<16x16xi32>
    %7 = arith.addi %6, %5 : vector<16x16xi32>
    %c16_i32_1 = arith.constant 16 : i32
    %8 = arith.muli %arg1, %c16_i32_1 : i32
    %9 = tpu.iota {dimensions = array<i32: 1>} : vector<16x16xi32>
    %10 = vector.broadcast %8 : i32 to vector<16x16xi32>
    %11 = arith.addi %10, %9 : vector<16x16xi32>
    %12 = arith.cmpi eq, %7, %11 : vector<16x16xi32>
    %c0_i32_2 = arith.constant 0 : i32
    %13 = vector.broadcast %c0_i32_2 : i32 to vector<16x16xi32>
    %c0_3 = arith.constant 0 : index
    %c0_4 = arith.constant 0 : index
    %c0_5 = arith.constant 0 : index
    %14 = vector.load %arg5[%c0_3, %c0_4, %c0_5] : memref<2x8x16xi32, #tpu.memory_space<vmem>>, vector<1x8x16xi32>
    %15 = vector.shape_cast %14 : vector<1x8x16xi32> to vector<8x16xi32>
    %16 = vector.extract_strided_slice %15 {offsets = [0, 0], sizes = [1, 16], strides = [1, 1]} : vector<8x16xi32> to vector<1x16xi32>
    %17 = vector.broadcast %16 : vector<1x16xi32> to vector<16x16xi32>
    %18 = arith.cmpi eq, %7, %17 : vector<16x16xi32>
    %19 = arith.extui %18 : vector<16x16xi1> to vector<16x16xi32>
    %20 = arith.addi %13, %19 : vector<16x16xi32>
    %21 = vector.extract_strided_slice %15 {offsets = [1, 0], sizes = [1, 16], strides = [1, 1]} : vector<8x16xi32> to vector<1x16xi32>
    %22 = vector.broadcast %21 : vector<1x16xi32> to vector<16x16xi32>
    %23 = arith.cmpi eq, %7, %22 : vector<16x16xi32>
    %24 = arith.extui %23 : vector<16x16xi1> to vector<16x16xi32>
    %25 = arith.addi %20, %24 : vector<16x16xi32>
    %26 = vector.extract_strided_slice %15 {offsets = [2, 0], sizes = [1, 16], strides = [1, 1]} : vector<8x16xi32> to vector<1x16xi32>
    %27 = vector.broadcast %26 : vector<1x16xi32> to vector<16x16xi32>
    %28 = arith.cmpi eq, %7, %27 : vector<16x16xi32>
    %29 = arith.extui %28 : vector<16x16xi1> to vector<16x16xi32>
    %30 = arith.addi %25, %29 : vector<16x16xi32>
    %31 = vector.extract_strided_slice %15 {offsets = [3, 0], sizes = [1, 16], strides = [1, 1]} : vector<8x16xi32> to vector<1x16xi32>
    %32 = vector.broadcast %31 : vector<1x16xi32> to vector<16x16xi32>
    %33 = arith.cmpi eq, %7, %32 : vector<16x16xi32>
    %34 = arith.extui %33 : vector<16x16xi1> to vector<16x16xi32>
    %35 = arith.addi %30, %34 : vector<16x16xi32>
    %36 = vector.extract_strided_slice %15 {offsets = [4, 0], sizes = [1, 16], strides = [1, 1]} : vector<8x16xi32> to vector<1x16xi32>
    %37 = vector.broadcast %36 : vector<1x16xi32> to vector<16x16xi32>
    %38 = arith.cmpi eq, %7, %37 : vector<16x16xi32>
    %39 = arith.extui %38 : vector<16x16xi1> to vector<16x16xi32>
    %40 = arith.addi %35, %39 : vector<16x16xi32>
    %41 = vector.extract_strided_slice %15 {offsets = [5, 0], sizes = [1, 16], strides = [1, 1]} : vector<8x16xi32> to vector<1x16xi32>
    %42 = vector.broadcast %41 : vector<1x16xi32> to vector<16x16xi32>
    %43 = arith.cmpi eq, %7, %42 : vector<16x16xi32>
    %44 = arith.extui %43 : vector<16x16xi1> to vector<16x16xi32>
    %45 = arith.addi %40, %44 : vector<16x16xi32>
    %46 = vector.extract_strided_slice %15 {offsets = [6, 0], sizes = [1, 16], strides = [1, 1]} : vector<8x16xi32> to vector<1x16xi32>
    %47 = vector.broadcast %46 : vector<1x16xi32> to vector<16x16xi32>
    %48 = arith.cmpi eq, %7, %47 : vector<16x16xi32>
    %49 = arith.extui %48 : vector<16x16xi1> to vector<16x16xi32>
    %50 = arith.addi %45, %49 : vector<16x16xi32>
    %51 = vector.extract_strided_slice %15 {offsets = [7, 0], sizes = [1, 16], strides = [1, 1]} : vector<8x16xi32> to vector<1x16xi32>
    %52 = vector.broadcast %51 : vector<1x16xi32> to vector<16x16xi32>
    %53 = arith.cmpi eq, %7, %52 : vector<16x16xi32>
    %54 = arith.extui %53 : vector<16x16xi1> to vector<16x16xi32>
    %55 = arith.addi %50, %54 : vector<16x16xi32>
    %56 = arith.sitofp %55 : vector<16x16xi32> to vector<16x16xf32>
    %cst = arith.constant 1.000000e+00 : f32
    %57 = arith.addf %cst, %0 : f32
    %58 = vector.broadcast %57 : f32 to vector<16x16xf32>
    %59 = arith.addf %56, %58 : vector<16x16xf32>
    %60 = arith.select %12, %59, %56 : vector<16x16xi1>, vector<16x16xf32>
    %c0_6 = arith.constant 0 : index
    %c0_7 = arith.constant 0 : index
    %c0_8 = arith.constant 0 : index
    %61 = vector.load %arg9[%c0_6, %c0_7, %c0_8] : memref<2x4x16xf32, #tpu.memory_space<vmem>>, vector<1x4x16xf32>
    %62 = vector.shape_cast %61 : vector<1x4x16xf32> to vector<4x16xf32>
    %c0_9 = arith.constant 0 : index
    %c0_10 = arith.constant 0 : index
    %c0_11 = arith.constant 0 : index
    %63 = vector.load %arg4[%c0_9, %c0_10, %c0_11] : memref<2x4x16xf32, #tpu.memory_space<vmem>>, vector<1x4x16xf32>
    %64 = vector.shape_cast %63 : vector<1x4x16xf32> to vector<4x16xf32>
    %cst_12 = arith.constant dense<0.000000e+00> : vector<4x16xf32>
    %65 = tpu.matmul %64, %60, %cst_12 {dimension_numbers = #tpu.dot_dimension_numbers<[1], [0], [0], [1], [0, 0, 1, 1], [], []>} : vector<4x16xf32>, vector<16x16xf32>, vector<4x16xf32> -> vector<4x16xf32>
    %66 = arith.addf %62, %65 : vector<4x16xf32>
    %c0_13 = arith.constant 0 : index
    %c0_14 = arith.constant 0 : index
    %c0_15 = arith.constant 0 : index
    %67 = vector.load %arg9[%c0_13, %c0_14, %c0_15] : memref<2x4x16xf32, #tpu.memory_space<vmem>>, vector<1x4x16xf32>
    %68 = vector.shape_cast %67 : vector<1x4x16xf32> to vector<4x16xf32>
    %69 = vector.shape_cast %66 : vector<4x16xf32> to vector<1x4x16xf32>
    tpu.vector_store %arg9[%c0_13, %c0_14, %c0_15], %69 {strides = array<i32>} : memref<2x4x16xf32, #tpu.memory_space<vmem>>, vector<1x4x16xf32>,
    %c0_i32_16 = arith.constant 0 : i32
    %70 = vector.broadcast %c0_i32_16 : i32 to vector<16x16xi32>
    %c1 = arith.constant 1 : index
    %c0_17 = arith.constant 0 : index
    %c0_18 = arith.constant 0 : index
    %71 = vector.load %arg5[%c1, %c0_17, %c0_18] : memref<2x8x16xi32, #tpu.memory_space<vmem>>, vector<1x8x16xi32>
    %72 = vector.shape_cast %71 : vector<1x8x16xi32> to vector<8x16xi32>
    %73 = vector.extract_strided_slice %72 {offsets = [0, 0], sizes = [1, 16], strides = [1, 1]} : vector<8x16xi32> to vector<1x16xi32>
    %74 = vector.broadcast %73 : vector<1x16xi32> to vector<16x16xi32>
    %75 = arith.cmpi eq, %7, %74 : vector<16x16xi32>
    %76 = arith.extui %75 : vector<16x16xi1> to vector<16x16xi32>
    %77 = arith.addi %70, %76 : vector<16x16xi32>
    %78 = vector.extract_strided_slice %72 {offsets = [1, 0], sizes = [1, 16], strides = [1, 1]} : vector<8x16xi32> to vector<1x16xi32>
    %79 = vector.broadcast %78 : vector<1x16xi32> to vector<16x16xi32>
    %80 = arith.cmpi eq, %7, %79 : vector<16x16xi32>
    %81 = arith.extui %80 : vector<16x16xi1> to vector<16x16xi32>
    %82 = arith.addi %77, %81 : vector<16x16xi32>
    %83 = vector.extract_strided_slice %72 {offsets = [2, 0], sizes = [1, 16], strides = [1, 1]} : vector<8x16xi32> to vector<1x16xi32>
    %84 = vector.broadcast %83 : vector<1x16xi32> to vector<16x16xi32>
    %85 = arith.cmpi eq, %7, %84 : vector<16x16xi32>
    %86 = arith.extui %85 : vector<16x16xi1> to vector<16x16xi32>
    %87 = arith.addi %82, %86 : vector<16x16xi32>
    %88 = vector.extract_strided_slice %72 {offsets = [3, 0], sizes = [1, 16], strides = [1, 1]} : vector<8x16xi32> to vector<1x16xi32>
    %89 = vector.broadcast %88 : vector<1x16xi32> to vector<16x16xi32>
    %90 = arith.cmpi eq, %7, %89 : vector<16x16xi32>
    %91 = arith.extui %90 : vector<16x16xi1> to vector<16x16xi32>
    %92 = arith.addi %87, %91 : vector<16x16xi32>
    %93 = vector.extract_strided_slice %72 {offsets = [4, 0], sizes = [1, 16], strides = [1, 1]} : vector<8x16xi32> to vector<1x16xi32>
    %94 = vector.broadcast %93 : vector<1x16xi32> to vector<16x16xi32>
    %95 = arith.cmpi eq, %7, %94 : vector<16x16xi32>
    %96 = arith.extui %95 : vector<16x16xi1> to vector<16x16xi32>
    %97 = arith.addi %92, %96 : vector<16x16xi32>
    %98 = vector.extract_strided_slice %72 {offsets = [5, 0], sizes = [1, 16], strides = [1, 1]} : vector<8x16xi32> to vector<1x16xi32>
    %99 = vector.broadcast %98 : vector<1x16xi32> to vector<16x16xi32>
    %100 = arith.cmpi eq, %7, %99 : vector<16x16xi32>
    %101 = arith.extui %100 : vector<16x16xi1> to vector<16x16xi32>
    %102 = arith.addi %97, %101 : vector<16x16xi32>
    %103 = vector.extract_strided_slice %72 {offsets = [6, 0], sizes = [1, 16], strides = [1, 1]} : vector<8x16xi32> to vector<1x16xi32>
    %104 = vector.broadcast %103 : vector<1x16xi32> to vector<16x16xi32>
    %105 = arith.cmpi eq, %7, %104 : vector<16x16xi32>
    %106 = arith.extui %105 : vector<16x16xi1> to vector<16x16xi32>
    %107 = arith.addi %102, %106 : vector<16x16xi32>
    %108 = vector.extract_strided_slice %72 {offsets = [7, 0], sizes = [1, 16], strides = [1, 1]} : vector<8x16xi32> to vector<1x16xi32>
    %109 = vector.broadcast %108 : vector<1x16xi32> to vector<16x16xi32>
    %110 = arith.cmpi eq, %7, %109 : vector<16x16xi32>
    %111 = arith.extui %110 : vector<16x16xi1> to vector<16x16xi32>
    %112 = arith.addi %107, %111 : vector<16x16xi32>
    %113 = arith.sitofp %112 : vector<16x16xi32> to vector<16x16xf32>
    %cst_19 = arith.constant 1.000000e+00 : f32
    %114 = arith.addf %cst_19, %0 : f32
    %115 = vector.broadcast %114 : f32 to vector<16x16xf32>
    %116 = arith.addf %113, %115 : vector<16x16xf32>
    %117 = arith.select %12, %116, %113 : vector<16x16xi1>, vector<16x16xf32>
    %c1_20 = arith.constant 1 : index
    %c0_21 = arith.constant 0 : index
    %c0_22 = arith.constant 0 : index
    %118 = vector.load %arg9[%c1_20, %c0_21, %c0_22] : memref<2x4x16xf32, #tpu.memory_space<vmem>>, vector<1x4x16xf32>
    %119 = vector.shape_cast %118 : vector<1x4x16xf32> to vector<4x16xf32>
    %c1_23 = arith.constant 1 : index
    %c0_24 = arith.constant 0 : index
    %c0_25 = arith.constant 0 : index
    %120 = vector.load %arg4[%c1_23, %c0_24, %c0_25] : memref<2x4x16xf32, #tpu.memory_space<vmem>>, vector<1x4x16xf32>
    %121 = vector.shape_cast %120 : vector<1x4x16xf32> to vector<4x16xf32>
    %cst_26 = arith.constant dense<0.000000e+00> : vector<4x16xf32>
    %122 = tpu.matmul %121, %117, %cst_26 {dimension_numbers = #tpu.dot_dimension_numbers<[1], [0], [0], [1], [0, 0, 1, 1], [], []>} : vector<4x16xf32>, vector<16x16xf32>, vector<4x16xf32> -> vector<4x16xf32>
    %123 = arith.addf %119, %122 : vector<4x16xf32>
    %c1_27 = arith.constant 1 : index
    %c0_28 = arith.constant 0 : index
    %c0_29 = arith.constant 0 : index
    %124 = vector.load %arg9[%c1_27, %c0_28, %c0_29] : memref<2x4x16xf32, #tpu.memory_space<vmem>>, vector<1x4x16xf32>
    %125 = vector.shape_cast %124 : vector<1x4x16xf32> to vector<4x16xf32>
    %126 = vector.shape_cast %123 : vector<4x16xf32> to vector<1x4x16xf32>
    tpu.vector_store %arg9[%c1_27, %c0_28, %c0_29], %126 {strides = array<i32>} : memref<2x4x16xf32, #tpu.memory_space<vmem>>, vector<1x4x16xf32>,
    %c0_i32_30 = arith.constant 0 : i32
    %127 = arith.cmpi eq, %arg2, %c0_i32_30 : i32
    %128 = arith.extui %127 : i1 to i32
    %c0_i32_31 = arith.constant 0 : i32
    %129 = arith.cmpi ne, %128, %c0_i32_31 : i32
    scf.if %129 {
      %c0_32 = arith.constant 0 : index
      %c0_33 = arith.constant 0 : index
      %130 = vector.load %arg7[%c0_32, %c0_33] : memref<8x1xf32, #tpu.memory_space<vmem>>, vector<8x1xf32>
      %c0_34 = arith.constant 0 : index
      %c0_35 = arith.constant 0 : index
      %131 = vector.load %arg6[%c0_34, %c0_35] : memref<8x4xf32, #tpu.memory_space<vmem>>, vector<8x4xf32>
      %c0_36 = arith.constant 0 : index
      %c0_37 = arith.constant 0 : index
      %c0_38 = arith.constant 0 : index
      %132 = vector.load %arg9[%c0_36, %c0_37, %c0_38] : memref<2x4x16xf32, #tpu.memory_space<vmem>>, vector<1x4x16xf32>
      %133 = vector.shape_cast %132 : vector<1x4x16xf32> to vector<4x16xf32>
      %cst_39 = arith.constant dense<0.000000e+00> : vector<8x16xf32>
      %134 = tpu.matmul %131, %133, %cst_39 {dimension_numbers = #tpu.dot_dimension_numbers<[1], [0], [0], [1], [0, 0, 1, 1], [], []>} : vector<8x4xf32>, vector<4x16xf32>, vector<8x16xf32> -> vector<8x16xf32>
      %135 = vector.broadcast %130 : vector<8x1xf32> to vector<8x16xf32>
      %136 = arith.addf %134, %135 : vector<8x16xf32>
      %cst_40 = arith.constant 0.000000e+00 : f32
      %137 = vector.broadcast %cst_40 : f32 to vector<8x16xf32>
      %138 = arith.maximumf %136, %137 : vector<8x16xf32>
      %c0_41 = arith.constant 0 : index
      %c0_42 = arith.constant 0 : index
      %c0_43 = arith.constant 0 : index
      %139 = vector.load %arg8[%c0_41, %c0_42, %c0_43] : memref<2x8x16xf32, #tpu.memory_space<vmem>>, vector<1x8x16xf32>
      %140 = vector.shape_cast %139 : vector<1x8x16xf32> to vector<8x16xf32>
      %141 = vector.shape_cast %138 : vector<8x16xf32> to vector<1x8x16xf32>
      tpu.vector_store %arg8[%c0_41, %c0_42, %c0_43], %141 {strides = array<i32>} : memref<2x8x16xf32, #tpu.memory_space<vmem>>, vector<1x8x16xf32>,
      %c1_44 = arith.constant 1 : index
      %c0_45 = arith.constant 0 : index
      %c0_46 = arith.constant 0 : index
      %142 = vector.load %arg9[%c1_44, %c0_45, %c0_46] : memref<2x4x16xf32, #tpu.memory_space<vmem>>, vector<1x4x16xf32>
      %143 = vector.shape_cast %142 : vector<1x4x16xf32> to vector<4x16xf32>
      %cst_47 = arith.constant dense<0.000000e+00> : vector<8x16xf32>
      %144 = tpu.matmul %131, %143, %cst_47 {dimension_numbers = #tpu.dot_dimension_numbers<[1], [0], [0], [1], [0, 0, 1, 1], [], []>} : vector<8x4xf32>, vector<4x16xf32>, vector<8x16xf32> -> vector<8x16xf32>
      %145 = vector.broadcast %130 : vector<8x1xf32> to vector<8x16xf32>
      %146 = arith.addf %144, %145 : vector<8x16xf32>
      %cst_48 = arith.constant 0.000000e+00 : f32
      %147 = vector.broadcast %cst_48 : f32 to vector<8x16xf32>
      %148 = arith.maximumf %146, %147 : vector<8x16xf32>
      %c1_49 = arith.constant 1 : index
      %c0_50 = arith.constant 0 : index
      %c0_51 = arith.constant 0 : index
      %149 = vector.load %arg8[%c1_49, %c0_50, %c0_51] : memref<2x8x16xf32, #tpu.memory_space<vmem>>, vector<1x8x16xf32>
      %150 = vector.shape_cast %149 : vector<1x8x16xf32> to vector<8x16xf32>
      %151 = vector.shape_cast %148 : vector<8x16xf32> to vector<1x8x16xf32>
      tpu.vector_store %arg8[%c1_49, %c0_50, %c0_51], %151 {strides = array<i32>} : memref<2x8x16xf32, #tpu.memory_space<vmem>>, vector<1x8x16xf32>,
    } else {
    }
    return
  }
  func.func @transform_0(%arg0: i32, %arg1: i32, %arg2: i32, %arg3: memref<1xf32, #tpu.memory_space<smem>>) -> (i32, i32, i32) {
    %c0_i32 = arith.constant 0 : i32
    %c0_i32_0 = arith.constant 0 : i32
    return %arg0, %c0_i32, %arg2 : i32, i32, i32
  }
  func.func @transform_1(%arg0: i32, %arg1: i32, %arg2: i32, %arg3: memref<1xf32, #tpu.memory_space<smem>>) -> (i32, i32, i32) {
    %c0_i32 = arith.constant 0 : i32
    %c0_i32_0 = arith.constant 0 : i32
    return %arg0, %c0_i32, %arg1 : i32, i32, i32
  }
  func.func @transform_2(%arg0: i32, %arg1: i32, %arg2: i32, %arg3: memref<1xf32, #tpu.memory_space<smem>>) -> (i32, i32) {
    %c0_i32 = arith.constant 0 : i32
    %c0_i32_0 = arith.constant 0 : i32
    %c0_i32_1 = arith.constant 0 : i32
    return %c0_i32, %c0_i32_0 : i32, i32
  }
  func.func @transform_3(%arg0: i32, %arg1: i32, %arg2: i32, %arg3: memref<1xf32, #tpu.memory_space<smem>>) -> (i32, i32) {
    %c0_i32 = arith.constant 0 : i32
    %c0_i32_0 = arith.constant 0 : i32
    %c0_i32_1 = arith.constant 0 : i32
    return %c0_i32, %c0_i32_0 : i32, i32
  }
  func.func @transform_4(%arg0: i32, %arg1: i32, %arg2: i32, %arg3: memref<1xf32, #tpu.memory_space<smem>>) -> (i32, i32, i32) {
    %c0_i32 = arith.constant 0 : i32
    %c0_i32_0 = arith.constant 0 : i32
    return %arg0, %c0_i32, %arg1 : i32, i32, i32
  }
}

</mosaic_0001>

<llo_original>
// kernel: tpu_custom_call.1
$region0: #{tpu_custom_call.1}
  #allocation0 [shape = 'u32[]', space=smem, size = 0x4, offset = 0x4, fixed_abs, tag = 'smem constant byte address 0x4 - core index']
  #allocation1 [shape = 'u32[72,128]{1,0:T(1,128)}', space=vmem, size = 0x9000, scoped, tag = 'internal scratch']
  #allocation2 [shape = 'f32[2,4,16]{2,1,0:T(4,128)}', space=vmem, size = 0x1000, scoped, tag = 'scratch operand']
  #allocation3 [shape = 's32[1]{0}', space=sflag, size = 0x4, scoped, tag = 'scoped memory for tpu_custom_call.1']
  #allocation4 [shape = 'f32[1]{0:T(128)S(6)}', space=smem, size = 0x200, scoped, tag = 'prefetched SMEM operand 0']
  %s0 = inlined_call_operand.<no memory space> [shape: f32[1], index: 0, kind: input, shape index: {}]
  %s1 = inlined_call_operand.hbm [shape: f32[2,4,16], index: 1, kind: input, shape index: {}]
  %s2 = inlined_call_operand.vmem [shape: s32[2,8,16], index: 2, kind: input, shape index: {}]
  %s3 = inlined_call_operand.vmem [shape: f32[8,4], index: 3, kind: input, shape index: {}]
  %s4 = inlined_call_operand.vmem [shape: f32[8,1], index: 4, kind: input, shape index: {}]
  %s5 = inlined_call_operand.hbm [shape: f32[2,8,16], index: 5, kind: output, shape index: {}]
  %s6 = sld [smem:[#allocation0]]
  $region38: #{tpu_custom_call.1} parent=0
    _
  %s8 = ssub.s32 1, %s6
  %s9 = scalar_select 0, %s8, %s6
  %10 = sst [smem:[#allocation4]] %s0
  $region1: #{tpu_custom_call.1} parent=0
    #allocation5 [shape = 'u8[4096]{0}', space=vmem, size = 0x1000, scoped, tag = 'input window, operand 1, single buffered']
    #allocation6 [shape = 's32[1]{0}', space=sflag, size = 0x4, scoped, tag = 'scoped memory for tpu_custom_call.1']
    #allocation7 [shape = 's32[1]{0}', space=sflag, size = 0x4, scoped, tag = 'scoped memory for tpu_custom_call.1']
    #allocation8 [shape = 'u8[8192]{0}', space=vmem, size = 0x2000, scoped, tag = 'output window, operand 0, single buffered']
    %11 = vsyncpa [#allocation6], 0
    %12 = vsyncpa [#allocation7], 0
    // Predicated region
    $region2: #{tpu_custom_call.1} parent=1 // pred_check
      _
    $region3: #{tpu_custom_call.1} parent=1 // pred_check_branch
      %14 = sbr.rel (0) target = $region5
    $region4: #{tpu_custom_call.1} parent=1 // pred_region
      %16 = vsyncadd [#allocation6], 0
      %s17 = sshll.u32 %s1, 4
      %s18 = int_to_ptr.hbm [resolvable:$true] %s17
      %s19 = sshll.u32 [#allocation5], 4
      %s20 = int_to_ptr.vmem [resolvable:$true] %s19
      %25 = dma.hbm_to_vmem [thread:$0]  %s18, 128, %s20, [#allocation6], 64, 64, 4
    $region5: #{tpu_custom_call.1} parent=1 // pred_fallthru
      _
    // Predicated region
    $region6: #{tpu_custom_call.1} parent=1 // pred_check
      _
    $region7: #{tpu_custom_call.1} parent=1 // pred_check_branch
      %27 = sbr.rel (0) target = $region9
    $region8: #{tpu_custom_call.1} parent=1 // pred_region
      _
    $region9: #{tpu_custom_call.1} parent=1 // pred_fallthru
      _
    // Predicated region
    $region10: #{tpu_custom_call.1} parent=1 // pred_check
      _
    $region11: #{tpu_custom_call.1} parent=1 // pred_check_branch
      %29 = sbr.rel (0) target = $region13
    $region12: #{tpu_custom_call.1} parent=1 // pred_region
      _
    $region13: #{tpu_custom_call.1} parent=1 // pred_fallthru
      _
    // Predicated region
    $region14: #{tpu_custom_call.1} parent=1 // pred_check
      _
    $region15: #{tpu_custom_call.1} parent=1 // pred_check_branch
      %31 = sbr.rel (0) target = $region17
    $region16: #{tpu_custom_call.1} parent=1 // pred_region
      _
    $region17: #{tpu_custom_call.1} parent=1 // pred_fallthru
      _
    // Predicated region
    $region18: #{tpu_custom_call.1} parent=1 // pred_check
      _
    $region19: #{tpu_custom_call.1} parent=1 // pred_check_branch
      %33 = sbr.rel (0) target = $region21
    $region20: #{tpu_custom_call.1} parent=1 // pred_region
      %35 = dma.done [#allocation6], 128
    $region21: #{tpu_custom_call.1} parent=1 // pred_fallthru
      _
    %s36 = sld [smem:[#allocation4]]
    %p37 = scmp.eq.s32.totalorder 0, 0
    // Predicated region
    $region22: #{tpu_custom_call.1} parent=1 // pred_check
      %p38 = pneg %p37
    $region23: #{tpu_custom_call.1} parent=1 // pred_check_branch
      %40 = sbr.rel (%p38) target = $region25
    $region24: #{tpu_custom_call.1} parent=1 // pred_region
      %vm41 = vcmask 125952
      %42 = vst.msk [vmem:[#allocation2] sm:$0xf] %vm41, 0.0
      %43 = vst.msk [vmem:[#allocation2 + $0x4] sm:$0xf] %vm41, 0.0
    $region25: #{tpu_custom_call.1} parent=1 // pred_fallthru
      _
    %s44 = smul.u32 0, 16
    %v45 = vlaneseq
    %v46 = vshrl.u32 %v45, 7
    %v47 = vadd.s32 %v46, 8
    %v48 = vstv %s44
    %v49 = vadd.s32 %v48, %v46
    %v50 = vadd.s32 %v48, %v47
    %s51 = smul.u32 0, 16
    %v52 = vlaneseq
    %v53 = vand.u32 %v52, 127
    %v54 = vstv %s51
    %v55 = vadd.s32 %v54, %v53
    %vm56 = vcmp.eq.s32.totalorder %v49, %v55
    %vm57 = vcmp.eq.s32.totalorder %v50, %v55
    %v58 = vld [vmem:[%s2] sm:$0xff]
    %v59 = vperm.slane %v58, 0
    %vm60 = vcmp.eq.s32.totalorder %v49, %v59
    %vm61 = vcmp.eq.s32.totalorder %v50, %v59
    %v62 = vsel %vm60, 1, 0
    %v63 = vsel %vm61, 1, 0
    %v64 = vperm.slane %v58, 1
    %vm65 = vcmp.eq.s32.totalorder %v49, %v64
    %vm66 = vcmp.eq.s32.totalorder %v50, %v64
    %v67 = vsel %vm65, 1, 0
    %v68 = vsel %vm66, 1, 0
    %v69 = vadd.s32 %v62, %v67
    %v70 = vadd.s32 %v63, %v68
    %v71 = vperm.slane %v58, 2
    %vm72 = vcmp.eq.s32.totalorder %v49, %v71
    %vm73 = vcmp.eq.s32.totalorder %v50, %v71
    %v74 = vsel %vm72, 1, 0
    %v75 = vsel %vm73, 1, 0
    %v76 = vadd.s32 %v69, %v74
    %v77 = vadd.s32 %v70, %v75
    %v78 = vperm.slane %v58, 3
    %vm79 = vcmp.eq.s32.totalorder %v49, %v78
    %vm80 = vcmp.eq.s32.totalorder %v50, %v78
    %v81 = vsel %vm79, 1, 0
    %v82 = vsel %vm80, 1, 0
    %v83 = vadd.s32 %v76, %v81
    %v84 = vadd.s32 %v77, %v82
    %v85 = vperm.slane %v58, 4
    %vm86 = vcmp.eq.s32.totalorder %v49, %v85
    %vm87 = vcmp.eq.s32.totalorder %v50, %v85
    %v88 = vsel %vm86, 1, 0
    %v89 = vsel %vm87, 1, 0
    %v90 = vadd.s32 %v83, %v88
    %v91 = vadd.s32 %v84, %v89
    %v92 = vperm.slane %v58, 5
    %vm93 = vcmp.eq.s32.totalorder %v49, %v92
    %vm94 = vcmp.eq.s32.totalorder %v50, %v92
    %v95 = vsel %vm93, 1, 0
    %v96 = vsel %vm94, 1, 0
    %v97 = vadd.s32 %v90, %v95
    %v98 = vadd.s32 %v91, %v96
    %v99 = vperm.slane %v58, 6
    %vm100 = vcmp.eq.s32.totalorder %v49, %v99
    %vm101 = vcmp.eq.s32.totalorder %v50, %v99
    %v102 = vsel %vm100, 1, 0
    %v103 = vsel %vm101, 1, 0
    %v104 = vadd.s32 %v97, %v102
    %v105 = vadd.s32 %v98, %v103
    %v106 = vperm.slane %v58, 7
    %vm107 = vcmp.eq.s32.totalorder %v49, %v106
    %vm108 = vcmp.eq.s32.totalorder %v50, %v106
    %v109 = vsel %vm107, 1, 0
    %v110 = vsel %vm108, 1, 0
    %v111 = vadd.s32 %v104, %v109
    %v112 = vadd.s32 %v105, %v110
    %v113 = vcvt.s32.f32 %v111
    %v114 = vcvt.s32.f32 %v112
    %s115 = sadd.f32 %s36, 1.0
    %v116 = vstv %s115
    %v117 = vadd.f32 %v113, %v116
    %v118 = vadd.f32 %v114, %v116
    %v119 = vsel %vm56, %v117, %v113
    %v120 = vsel %vm57, %v118, %v114
    %v121 = vld [vmem:[#allocation2] sm:$0xf]
    %v122 = vld [vmem:[#allocation5] sm:$0xf]
    %vm123 = vcmask 130048
    %v125 = vsel %vm123, %v122, 0
    %127 = vmatpush.msra.mxu0 0.0
    %128 = vmatpush.msra.mxu0 0.0
    %129 = vmatpush.msra.mxu0 0.0
    %130 = vmatpush.msra.mxu0 0.0
    %131 = vmatpush.msra.mxu0 0.0
    %132 = vmatpush.msra.mxu0 0.0
    %133 = vmatpush.msra.mxu0 0.0
    %134 = vmatpush.msra.mxu0 0.0
    %135 = vmatpush.msra.mxu0 0.0
    %136 = vmatpush.msra.mxu0 0.0
    %137 = vmatpush.msra.mxu0 0.0
    %138 = vmatpush.msra.mxu0 0.0
    %139 = vmatpush.msra.mxu0 0.0
    %140 = vmatpush.msra.mxu0 0.0
    %141 = vmatpush.msra.mxu0 %v120
    %142 = vmatpush.msra.mxu0 %v119
    %143 = vmatmul.f32.gmra.mxu0 %v125
    %v144 = vpop.f32.mrf.mxu0
    %v145 = vadd.f32 0.0, %v144
    %146 = vdwg.mxu0
    %v147 = vadd.f32 %v121, %v145
    %vm148 = vcmask 125952
    %149 = vst.msk [vmem:[#allocation2] sm:$0xf] %vm148, %v147
    %s150 = scalar_lea.vmem %s2, 8
    %v151 = vld [vmem:[%s150] sm:$0xff]
    %v152 = vperm.slane %v151, 0
    %vm153 = vcmp.eq.s32.totalorder %v49, %v152
    %vm154 = vcmp.eq.s32.totalorder %v50, %v152
    %v155 = vsel %vm153, 1, 0
    %v156 = vsel %vm154, 1, 0
    %v157 = vperm.slane %v151, 1
    %vm158 = vcmp.eq.s32.totalorder %v49, %v157
    %vm159 = vcmp.eq.s32.totalorder %v50, %v157
    %v160 = vsel %vm158, 1, 0
    %v161 = vsel %vm159, 1, 0
    %v162 = vadd.s32 %v155, %v160
    %v163 = vadd.s32 %v156, %v161
    %v164 = vperm.slane %v151, 2
    %vm165 = vcmp.eq.s32.totalorder %v49, %v164
    %vm166 = vcmp.eq.s32.totalorder %v50, %v164
    %v167 = vsel %vm165, 1, 0
    %v168 = vsel %vm166, 1, 0
    %v169 = vadd.s32 %v162, %v167
    %v170 = vadd.s32 %v163, %v168
    %v171 = vperm.slane %v151, 3
    %vm172 = vcmp.eq.s32.totalorder %v49, %v171
    %vm173 = vcmp.eq.s32.totalorder %v50, %v171
    %v174 = vsel %vm172, 1, 0
    %v175 = vsel %vm173, 1, 0
    %v176 = vadd.s32 %v169, %v174
    %v177 = vadd.s32 %v170, %v175
    %v178 = vperm.slane %v151, 4
    %vm179 = vcmp.eq.s32.totalorder %v49, %v178
    %vm180 = vcmp.eq.s32.totalorder %v50, %v178
    %v181 = vsel %vm179, 1, 0
    %v182 = vsel %vm180, 1, 0
    %v183 = vadd.s32 %v176, %v181
    %v184 = vadd.s32 %v177, %v182
    %v185 = vperm.slane %v151, 5
    %vm186 = vcmp.eq.s32.totalorder %v49, %v185
    %vm187 = vcmp.eq.s32.totalorder %v50, %v185
    %v188 = vsel %vm186, 1, 0
    %v189 = vsel %vm187, 1, 0
    %v190 = vadd.s32 %v183, %v188
    %v191 = vadd.s32 %v184, %v189
    %v192 = vperm.slane %v151, 6
    %vm193 = vcmp.eq.s32.totalorder %v49, %v192
    %vm194 = vcmp.eq.s32.totalorder %v50, %v192
    %v195 = vsel %vm193, 1, 0
    %v196 = vsel %vm194, 1, 0
    %v197 = vadd.s32 %v190, %v195
    %v198 = vadd.s32 %v191, %v196
    %v199 = vperm.slane %v151, 7
    %vm200 = vcmp.eq.s32.totalorder %v49, %v199
    %vm201 = vcmp.eq.s32.totalorder %v50, %v199
    %v202 = vsel %vm200, 1, 0
    %v203 = vsel %vm201, 1, 0
    %v204 = vadd.s32 %v197, %v202
    %v205 = vadd.s32 %v198, %v203
    %v206 = vcvt.s32.f32 %v204
    %v207 = vcvt.s32.f32 %v205
    %v208 = vadd.f32 %v206, %v116
    %v209 = vadd.f32 %v207, %v116
    %v210 = vsel %vm56, %v208, %v206
    %v211 = vsel %vm57, %v209, %v207
    %s212 = scalar_lea.vmem [#allocation2], 4
    %v213 = vld [vmem:[%s212] sm:$0xf]
    %s214 = scalar_lea.vmem [#allocation5], 4
    %v215 = vld [vmem:[%s214] sm:$0xf]
    %v217 = vsel %vm123, %v215, 0
    %219 = vmatpush.msra.mxu0 0.0
    %220 = vmatpush.msra.mxu0 0.0
    %221 = vmatpush.msra.mxu0 0.0
    %222 = vmatpush.msra.mxu0 0.0
    %223 = vmatpush.msra.mxu0 0.0
    %224 = vmatpush.msra.mxu0 0.0
    %225 = vmatpush.msra.mxu0 0.0
    %226 = vmatpush.msra.mxu0 0.0
    %227 = vmatpush.msra.mxu0 0.0
    %228 = vmatpush.msra.mxu0 0.0
    %229 = vmatpush.msra.mxu0 0.0
    %230 = vmatpush.msra.mxu0 0.0
    %231 = vmatpush.msra.mxu0 0.0
    %232 = vmatpush.msra.mxu0 0.0
    %233 = vmatpush.msra.mxu0 %v211
    %234 = vmatpush.msra.mxu0 %v210
    %235 = vmatmul.f32.gmra.mxu0 %v217
    %v236 = vpop.f32.mrf.mxu0
    %v237 = vadd.f32 0.0, %v236
    %238 = vdwg.mxu0
    %v239 = vadd.f32 %v213, %v237
    %240 = vst.msk [vmem:[%s212] sm:$0xf] %vm148, %v239
    // Predicated region
    $region26: #{tpu_custom_call.1} parent=1 // pred_check
      %p241 = pneg %p37
    $region27: #{tpu_custom_call.1} parent=1 // pred_check_branch
      %243 = sbr.rel (%p241) target = $region29
    $region28: #{tpu_custom_call.1} parent=1 // pred_region
      %v244 = vld [vmem:[%s4] sm:$0xff]
      %v245 = vld [vmem:[%s3] sm:$0xff]
      %v246 = vld [vmem:[#allocation2] sm:$0xf]
      %248 = vset.pattern.permute.xlu0 0
      %249 = vperm.xlu0 %248, %v244
      %v250 = vpop.permute.xlu0 %249
      %vm252 = vcmask 31744
      %v254 = vsel %vm252, %v245, 0
      %vm256 = vcmask 1043456
      %v258 = vsel %vm256, %v246, 0
      %260 = vmatpush.msra.mxu0 0.0
      %261 = vmatpush.msra.mxu0 0.0
      %262 = vmatpush.msra.mxu0 0.0
      %263 = vmatpush.msra.mxu0 0.0
      %264 = vmatpush.msra.mxu0 0.0
      %265 = vmatpush.msra.mxu0 0.0
      %266 = vmatpush.msra.mxu0 0.0
      %267 = vmatpush.msra.mxu0 0.0
      %268 = vmatpush.msra.mxu0 0.0
      %269 = vmatpush.msra.mxu0 0.0
      %270 = vmatpush.msra.mxu0 0.0
      %271 = vmatpush.msra.mxu0 0.0
      %272 = vmatpush.msra.mxu0 0.0
      %273 = vmatpush.msra.mxu0 0.0
      %274 = vmatpush.msra.mxu0 0.0
      %275 = vmatpush.msra.mxu0 %v258
      %276 = vmatmul.f32.gmra.mxu0 %v254
      %v277 = vpop.f32.mrf.mxu0
      %v278 = vadd.f32 %v250, %v277
      %279 = vdwg.mxu0
      %v280 = vmax.f32 %v278, 0.0
      %281 = vst.msk [vmem:[#allocation8] sm:$0xff] %vm123, %v280
      %v282 = vld [vmem:[%s212] sm:$0xf]
      %v284 = vsel %vm256, %v282, 0
      %286 = vmatpush.msra.mxu0 0.0
      %287 = vmatpush.msra.mxu0 0.0
      %288 = vmatpush.msra.mxu0 0.0
      %289 = vmatpush.msra.mxu0 0.0
      %290 = vmatpush.msra.mxu0 0.0
      %291 = vmatpush.msra.mxu0 0.0
      %292 = vmatpush.msra.mxu0 0.0
      %293 = vmatpush.msra.mxu0 0.0
      %294 = vmatpush.msra.mxu0 0.0
      %295 = vmatpush.msra.mxu0 0.0
      %296 = vmatpush.msra.mxu0 0.0
      %297 = vmatpush.msra.mxu0 0.0
      %298 = vmatpush.msra.mxu0 0.0
      %299 = vmatpush.msra.mxu0 0.0
      %300 = vmatpush.msra.mxu0 0.0
      %301 = vmatpush.msra.mxu0 %v284
      %302 = vmatmul.f32.gmra.mxu0 %v254
      %v303 = vpop.f32.mrf.mxu0
      %v304 = vadd.f32 %v250, %v303
      %305 = vdwg.mxu0
      %v306 = vmax.f32 %v304, 0.0
      %s307 = scalar_lea.vmem [#allocation8], 8
      %308 = vst.msk [vmem:[%s307] sm:$0xff] %vm123, %v306
    $region29: #{tpu_custom_call.1} parent=1 // pred_fallthru
      _
    // Predicated region
    $region30: #{tpu_custom_call.1} parent=1 // pred_check
      _
    $region31: #{tpu_custom_call.1} parent=1 // pred_check_branch
      %310 = sbr.rel (0) target = $region33
    $region32: #{tpu_custom_call.1} parent=1 // pred_region
      %312 = vsyncadd [#allocation7], 0
      %s313 = sshll.u32 [#allocation8], 4
      %s314 = int_to_ptr.vmem [resolvable:$true] %s313
      %s315 = sshll.u32 %s5, 4
      %s316 = int_to_ptr.hbm [resolvable:$true] %s315
      %321 = dma.vmem_to_hbm [thread:$0]  %s314, 256, %s316, [#allocation7], 128, 128, 8
    $region33: #{tpu_custom_call.1} parent=1 // pred_fallthru
      _
    // Predicated region
    $region34: #{tpu_custom_call.1} parent=1 // pred_check
      _
    $region35: #{tpu_custom_call.1} parent=1 // pred_check_branch
      %323 = sbr.rel (0) target = $region37
    $region36: #{tpu_custom_call.1} parent=1 // pred_region
      %325 = dma.done [#allocation7], 256
    $region37: #{tpu_custom_call.1} parent=1 // pred_fallthru
      _
    %326 = vsyncpa [#allocation6], 1
    %327 = vsyncpa [#allocation7], 1

</llo_original>
